<compile_context>
chip_gen: v5e
topology: v5e:2x2
jax: 0.10.0
libtpu: 0.0.40
codegen_flags: <defaults>
</compile_context>

<pallas_src>
from math import sqrt

import jax
import jax.numpy as jnp
from jax.experimental import pallas as pl
from jax.experimental.pallas import tpu as pltpu


# ----------------------------------------------------------------------------
# Kernels
# ----------------------------------------------------------------------------
def _ce_kernel(lab_ref, emb_ref, wt_ref, bias_ref, ce_ref, m_scr, l_scr, p_scr):
    """Per-row cross-entropy via online softmax, tiled over the class dim."""
    ci = pl.program_id(1)
    n_c = pl.num_programs(1)

    @pl.when(ci == 0)
    def _init():
        m_scr[...] = jnp.full_like(m_scr, -jnp.inf)
        l_scr[...] = jnp.zeros_like(l_scr)
        p_scr[...] = jnp.zeros_like(p_scr)

    # (tB, tC) logits slab for this class tile (f32 accumulation on the MXU).
    logits = jnp.dot(emb_ref[...], wt_ref[...],
                     preferred_element_type=jnp.float32) + bias_ref[...]
    t_b, t_c = logits.shape

    # Picked logit: compare each column's global class id against the label.
    # No f32 one-hot tensor is materialized; everything stays keepdims (tB,1).
    class_ids = ci * t_c + jax.lax.broadcasted_iota(jnp.int32, (t_b, t_c), 1)
    hit = class_ids == lab_ref[...]                         # (tB, tC) bool
    # TODO(synk): labels outside [0, C) silently contribute 0 here (PyTorch
    # would raise); add a pl.debug_check if range validation is needed.
    p_scr[...] += jnp.sum(jnp.where(hit, logits, 0.0), axis=1, keepdims=True)

    # Online softmax accumulators.
    m_prev = m_scr[...]
    m_new = jnp.maximum(m_prev, jnp.max(logits, axis=1, keepdims=True))
    alpha = jnp.exp(m_prev - m_new)
    l_scr[...] = alpha * l_scr[...] + jnp.sum(jnp.exp(logits - m_new),
                                              axis=1, keepdims=True)
    m_scr[...] = m_new

    @pl.when(ci == n_c - 1)
    def _finalize():
        # per-row CE = logsumexp - picked_logit, written once per B tile.
        ce_ref[...] = m_scr[...] + jnp.log(l_scr[...]) - p_scr[...]


def _center_kernel(lab_pref, emb_ref, cen_ref, out_ref):
    """Per-row center loss; cen_ref is the label-gathered center row."""
    del lab_pref  # gather happens in the BlockSpec index_map (scalar prefetch)
    eps2 = jnp.float32(1e-24)  # max(||x||^2, 1e-24) == max(||x||, 1e-12) in f32
    emb = emb_ref[...].astype(jnp.float32)                  # (1, D)
    cen = cen_ref[...].astype(jnp.float32)                  # (1, D)
    emb_n = emb * jax.lax.rsqrt(
        jnp.maximum(jnp.sum(emb * emb, axis=1, keepdims=True), eps2))
    cen_n = cen * jax.lax.rsqrt(
        jnp.maximum(jnp.sum(cen * cen, axis=1, keepdims=True), eps2))
    d = emb_n - cen_n
    out_ref[...] = jnp.sum(d * d, axis=1, keepdims=True)    # (1, 1)


def _logits_kernel(emb_ref, wt_ref, bias_ref, out_ref):
    out_ref[...] = (jnp.dot(emb_ref[...], wt_ref[...],
                            preferred_element_type=jnp.float32)
                    + bias_ref[...]).astype(out_ref.dtype)


# ----------------------------------------------------------------------------
# Wrapper (the "module")
# ----------------------------------------------------------------------------
def _tile(n, target):
    """Use `target` as the tile if it cleanly divides n, else the full dim."""
    return target if (n >= target and n % target == 0) else n


def init_norm_center_loss_params(key, in_features: int, num_classes: int):
    """Deterministic synthetic init matching the PyTorch module's shapes/bounds."""
    bound = sqrt(1.0 / in_features)
    k_c, k_w, k_b = jax.random.split(key, 3)
    centers = jax.random.uniform(k_c, (num_classes, in_features),
                                 jnp.float32, -bound, bound)
    fc_w = jax.random.uniform(k_w, (num_classes, in_features),
                              jnp.float32, -bound, bound)
    fc_b = jax.random.uniform(k_b, (num_classes,), jnp.float32, -bound, bound)
    return {"centers": centers, "fc_w": fc_w, "fc_b": fc_b}


def norm_center_loss_forward(params, embeddings, labels=None, *,
                             lambda_: float = 0.5, training: bool = True,
                             tb: int = 128, tc: int = 512, matmul_dtype=None):
    B, D = embeddings.shape
    C, _ = params["fc_w"].shape
    t_b = _tile(B, tb)
    t_c = _tile(C, tc)

    # One-time HBM-side transpose so the MXU contraction is (tB,D) @ (D,tC):
    # no in-kernel relayout of the RHS tile on any grid step.
    w_t = params["fc_w"].T                       # (D, C)
    bias = params["fc_b"].reshape(1, C)
    emb_mm = embeddings
    if matmul_dtype is not None:                 # opt-in bf16 MXU path (v6e/v7x)
        w_t = w_t.astype(matmul_dtype)
        emb_mm = embeddings.astype(matmul_dtype)

    vmem_cap = 48 * 1024 * 1024                  # < v7x's 64 MiB physical VMEM

    if not training:
        # TODO(synk): for very large D, split D into a K-accumulator loop; here
        # the whole (D, tC) W tile is streamed per step.
        return pl.pallas_call(
            _logits_kernel,
            out_shape=jax.ShapeDtypeStruct((B, C), embeddings.dtype),
            grid=(B // t_b, C // t_c),
            in_specs=[
                pl.BlockSpec((t_b, D), lambda b, c: (b, 0)),   # embeddings
                pl.BlockSpec((D, t_c), lambda b, c: (0, c)),   # W.T tile
                pl.BlockSpec((1, t_c), lambda b, c: (0, c)),   # bias tile
            ],
            out_specs=pl.BlockSpec((t_b, t_c), lambda b, c: (b, c)),
            compiler_params=pltpu.CompilerParams(
                dimension_semantics=("parallel", "parallel"),
                vmem_limit_bytes=vmem_cap),
        )(emb_mm, w_t, bias)

    assert labels is not None
    labels_i32 = labels.astype(jnp.int32)
    lab2d = labels_i32.reshape(B, 1)

    # ---- cross entropy: grid (B tiles, C tiles), online softmax over C ------
    ce_rows = pl.pallas_call(
        _ce_kernel,
        out_shape=jax.ShapeDtypeStruct((B, 1), jnp.float32),
        grid=(B // t_b, C // t_c),
        in_specs=[
            pl.BlockSpec((t_b, 1), lambda b, c: (b, 0)),   # labels (B,1) int32
            pl.BlockSpec((t_b, D), lambda b, c: (b, 0)),   # embeddings (mm dtype)
            pl.BlockSpec((D, t_c), lambda b, c: (0, c)),   # W.T tile (streamed)
            pl.BlockSpec((1, t_c), lambda b, c: (0, c)),   # bias tile
        ],
        out_specs=pl.BlockSpec((t_b, 1), lambda b, c: (b, 0)),
        scratch_shapes=[pltpu.VMEM((t_b, 1), jnp.float32)] * 3,  # m, l, picked
        compiler_params=pltpu.CompilerParams(
            dimension_semantics=("parallel", "arbitrary"),
            vmem_limit_bytes=vmem_cap),
    )(lab2d, emb_mm, w_t, bias)

    # ---- center loss: scalar-prefetched labels drive a data-dependent
    #      size-1-block gather of exactly the B needed center rows;
    #      normalization happens after the gather (B rows, not C). ------------
    center_rows = pl.pallas_call(
        _center_kernel,
        out_shape=jax.ShapeDtypeStruct((B, 1), jnp.float32),
        grid_spec=pltpu.PrefetchScalarGridSpec(
            num_scalar_prefetch=1,
            grid=(B,),
            in_specs=[
                pl.BlockSpec((1, D), lambda b, lab: (b, 0)),        # emb row b
                pl.BlockSpec((1, D), lambda b, lab: (lab[b], 0)),   # centers[labels[b]]
            ],
            out_specs=pl.BlockSpec((1, 1), lambda b, lab: (b, 0)),
        ),
        compiler_params=pltpu.CompilerParams(
            dimension_semantics=("arbitrary",)),
    )(labels_i32, embeddings, params["centers"])

    # Tiny final reduction (B elements) done wrapper-side; keeps the B grid
    # axes race-free ("parallel") on v7x megacore.
    inv_b = jnp.float32(1.0 / B)
    return (jnp.float32(lambda_) * jnp.sum(center_rows) * inv_b
            + jnp.sum(ce_rows) * inv_b)


# ----------------------------------------------------------------------------
# Pure-JAX reference (for a correctness sanity check)
# ----------------------------------------------------------------------------
def _reference(params, emb, labels, lambda_):
    hp = jax.lax.Precision.HIGHEST
    logits = jnp.dot(emb, params["fc_w"].T, precision=hp) + params["fc_b"]
    emb_n = emb / jnp.maximum(jnp.linalg.norm(emb, axis=1, keepdims=True), 1e-12)
    cen_n = params["centers"] / jnp.maximum(
        jnp.linalg.norm(params["centers"], axis=1, keepdims=True), 1e-12)
    cen_sel = cen_n[labels]
    center_loss = jnp.mean(jnp.sum((emb_n - cen_sel) ** 2, axis=1))
    lse = jax.scipy.special.logsumexp(logits, axis=1)
    ce = jnp.mean(lse - logits[jnp.arange(emb.shape[0]), labels])
    return lambda_ * center_loss + ce


if __name__ == "__main__":
    B, D, C = 16, 128, 256
    LAMBDA = 0.5

    key = jax.random.PRNGKey(0)
    k_p, k_e, k_l = jax.random.split(key, 3)
    params = init_norm_center_loss_params(k_p, D, C)
    embeddings = jax.random.normal(k_e, (B, D), jnp.float32)
    labels = jax.random.randint(k_l, (B,), 0, C, jnp.int32)

    # Training path (scalar loss). Small tiles so the (B, C) grid is exercised:
    # grid = (16/8, 256/128) = (2, 2).
    loss = norm_center_loss_forward(params, embeddings, labels,
                                    lambda_=LAMBDA, training=True,
                                    tb=8, tc=128)
    loss = jax.block_until_ready(loss)

    # Eval path (logits), tiled (tB, tC) lane-dense output.
    logits = norm_center_loss_forward(params, embeddings,
                                      lambda_=LAMBDA, training=False,
                                      tb=8, tc=128)
    logits = jax.block_until_ready(logits)

    ref_loss = _reference(params, embeddings, labels, LAMBDA)
    ref_logits = jnp.dot(embeddings, params["fc_w"].T,
                         precision=jax.lax.Precision.HIGHEST) + params["fc_b"]
    assert jnp.allclose(loss, ref_loss, rtol=1e-4, atol=1e-5), (loss, ref_loss)
    assert jnp.allclose(logits, ref_logits, rtol=1e-4, atol=1e-5)

    print("KERNEL_OK")
</pallas_src>

<mosaic_0001>
module attributes {stable_mosaic.version = 11 : i64} {
  func.func @_ce_kernel(%arg0: i32, %arg1: i32, %arg2: memref<8x1xi32, #tpu.memory_space<vmem>>, %arg3: memref<8x128xf32, #tpu.memory_space<vmem>>, %arg4: memref<128x128xf32, #tpu.memory_space<vmem>>, %arg5: memref<1x128xf32, #tpu.memory_space<vmem>>, %arg6: memref<8x1xf32, #tpu.memory_space<vmem>>, %arg7: memref<8x1xf32, #tpu.memory_space<vmem>>, %arg8: memref<8x1xf32, #tpu.memory_space<vmem>>, %arg9: memref<8x1xf32, #tpu.memory_space<vmem>>) attributes {dimension_semantics = [#tpu.dimension_semantics<parallel>, #tpu.dimension_semantics<arbitrary>], iteration_bounds = array<i64: 2, 2>, scalar_prefetch = 0 : i64, scratch_operands = 3 : i64, tpu.core_type = #tpu.core_type<tc>, window_params = [{transform_indices = @transform_0, window_bounds = array<i64: 8, 1>}, {transform_indices = @transform_1, window_bounds = array<i64: 8, 128>}, {transform_indices = @transform_2, window_bounds = array<i64: 128, 128>}, {transform_indices = @transform_3, window_bounds = array<i64: 1, 128>}, {transform_indices = @transform_4, window_bounds = array<i64: 8, 1>}]} {
    %c0_i32 = arith.constant 0 : i32
    %0 = arith.cmpi eq, %arg1, %c0_i32 : i32
    %1 = arith.extui %0 : i1 to i32
    %c0_i32_0 = arith.constant 0 : i32
    %2 = arith.cmpi ne, %1, %c0_i32_0 : i32
    scf.if %2 {
      %cst_25 = arith.constant 0xFF800000 : f32
      %42 = vector.broadcast %cst_25 : f32 to vector<8x1xf32>
      %c0_26 = arith.constant 0 : index
      %c0_27 = arith.constant 0 : index
      %43 = vector.load %arg7[%c0_26, %c0_27] : memref<8x1xf32, #tpu.memory_space<vmem>>, vector<8x1xf32>
      tpu.vector_store %arg7[%c0_26, %c0_27], %42 {strides = array<i32>} : memref<8x1xf32, #tpu.memory_space<vmem>>, vector<8x1xf32>,
      %cst_28 = arith.constant 0.000000e+00 : f32
      %44 = vector.broadcast %cst_28 : f32 to vector<8x1xf32>
      %c0_29 = arith.constant 0 : index
      %c0_30 = arith.constant 0 : index
      %45 = vector.load %arg8[%c0_29, %c0_30] : memref<8x1xf32, #tpu.memory_space<vmem>>, vector<8x1xf32>
      tpu.vector_store %arg8[%c0_29, %c0_30], %44 {strides = array<i32>} : memref<8x1xf32, #tpu.memory_space<vmem>>, vector<8x1xf32>,
      %cst_31 = arith.constant 0.000000e+00 : f32
      %46 = vector.broadcast %cst_31 : f32 to vector<8x1xf32>
      %c0_32 = arith.constant 0 : index
      %c0_33 = arith.constant 0 : index
      %47 = vector.load %arg9[%c0_32, %c0_33] : memref<8x1xf32, #tpu.memory_space<vmem>>, vector<8x1xf32>
      tpu.vector_store %arg9[%c0_32, %c0_33], %46 {strides = array<i32>} : memref<8x1xf32, #tpu.memory_space<vmem>>, vector<8x1xf32>,
    } else {
    }
    %c0 = arith.constant 0 : index
    %c0_1 = arith.constant 0 : index
    %3 = vector.load %arg3[%c0, %c0_1] : memref<8x128xf32, #tpu.memory_space<vmem>>, vector<8x128xf32>
    %c0_2 = arith.constant 0 : index
    %c0_3 = arith.constant 0 : index
    %4 = vector.load %arg4[%c0_2, %c0_3] : memref<128x128xf32, #tpu.memory_space<vmem>>, vector<128x128xf32>
    %cst = arith.constant dense<0.000000e+00> : vector<8x128xf32>
    %5 = tpu.matmul %3, %4, %cst {dimension_numbers = #tpu.dot_dimension_numbers<[1], [0], [0], [1], [0, 0, 1, 1], [], []>} : vector<8x128xf32>, vector<128x128xf32>, vector<8x128xf32> -> vector<8x128xf32>
    %c0_4 = arith.constant 0 : index
    %c0_5 = arith.constant 0 : index
    %6 = vector.load %arg5[%c0_4, %c0_5] : memref<1x128xf32, #tpu.memory_space<vmem>>, vector<1x128xf32>
    %7 = vector.broadcast %6 : vector<1x128xf32> to vector<8x128xf32>
    %8 = arith.addf %5, %7 : vector<8x128xf32>
    %c128_i32 = arith.constant 128 : i32
    %9 = arith.muli %arg1, %c128_i32 : i32
    %10 = tpu.iota {dimensions = array<i32: 1>} : vector<8x128xi32>
    %11 = vector.broadcast %9 : i32 to vector<8x128xi32>
    %12 = arith.addi %11, %10 : vector<8x128xi32>
    %c0_6 = arith.constant 0 : index
    %c0_7 = arith.constant 0 : index
    %13 = vector.load %arg2[%c0_6, %c0_7] : memref<8x1xi32, #tpu.memory_space<vmem>>, vector<8x1xi32>
    %14 = vector.broadcast %13 : vector<8x1xi32> to vector<8x128xi32>
    %15 = arith.cmpi eq, %12, %14 : vector<8x128xi32>
    %c0_8 = arith.constant 0 : index
    %c0_9 = arith.constant 0 : index
    %16 = vector.load %arg9[%c0_8, %c0_9] : memref<8x1xf32, #tpu.memory_space<vmem>>, vector<8x1xf32>
    %cst_10 = arith.constant 0.000000e+00 : f32
    %17 = vector.broadcast %cst_10 : f32 to vector<8x128xf32>
    %18 = arith.select %15, %8, %17 : vector<8x128xi1>, vector<8x128xf32>
    %cst_11 = arith.constant dense<0.000000e+00> : vector<8xf32>
    %19 = vector.multi_reduction <add>, %18, %cst_11 [1] : vector<8x128xf32> to vector<8xf32>
    %20 = vector.shape_cast %19 : vector<8xf32> to vector<8x1xf32>
    %21 = arith.addf %16, %20 : vector<8x1xf32>
    %c0_12 = arith.constant 0 : index
    %c0_13 = arith.constant 0 : index
    %22 = vector.load %arg9[%c0_12, %c0_13] : memref<8x1xf32, #tpu.memory_space<vmem>>, vector<8x1xf32>
    tpu.vector_store %arg9[%c0_12, %c0_13], %21 {strides = array<i32>} : memref<8x1xf32, #tpu.memory_space<vmem>>, vector<8x1xf32>,
    %c0_14 = arith.constant 0 : index
    %c0_15 = arith.constant 0 : index
    %23 = vector.load %arg7[%c0_14, %c0_15] : memref<8x1xf32, #tpu.memory_space<vmem>>, vector<8x1xf32>
    %cst_16 = arith.constant dense<0xFF800000> : vector<8xf32>
    %24 = vector.multi_reduction <maximumf>, %8, %cst_16 [1] : vector<8x128xf32> to vector<8xf32>
    %25 = vector.shape_cast %24 : vector<8xf32> to vector<8x1xf32>
    %26 = arith.maximumf %23, %25 : vector<8x1xf32>
    %27 = arith.subf %23, %26 : vector<8x1xf32>
    %28 = math.exp %27 : vector<8x1xf32>
    %c0_17 = arith.constant 0 : index
    %c0_18 = arith.constant 0 : index
    %29 = vector.load %arg8[%c0_17, %c0_18] : memref<8x1xf32, #tpu.memory_space<vmem>>, vector<8x1xf32>
    %30 = arith.mulf %28, %29 : vector<8x1xf32>
    %31 = vector.broadcast %26 : vector<8x1xf32> to vector<8x128xf32>
    %32 = arith.subf %8, %31 : vector<8x128xf32>
    %33 = math.exp %32 : vector<8x128xf32>
    %cst_19 = arith.constant dense<0.000000e+00> : vector<8xf32>
    %34 = vector.multi_reduction <add>, %33, %cst_19 [1] : vector<8x128xf32> to vector<8xf32>
    %35 = vector.shape_cast %34 : vector<8xf32> to vector<8x1xf32>
    %36 = arith.addf %30, %35 : vector<8x1xf32>
    %c0_20 = arith.constant 0 : index
    %c0_21 = arith.constant 0 : index
    %37 = vector.load %arg8[%c0_20, %c0_21] : memref<8x1xf32, #tpu.memory_space<vmem>>, vector<8x1xf32>
    tpu.vector_store %arg8[%c0_20, %c0_21], %36 {strides = array<i32>} : memref<8x1xf32, #tpu.memory_space<vmem>>, vector<8x1xf32>,
    %c0_22 = arith.constant 0 : index
    %c0_23 = arith.constant 0 : index
    %38 = vector.load %arg7[%c0_22, %c0_23] : memref<8x1xf32, #tpu.memory_space<vmem>>, vector<8x1xf32>
    tpu.vector_store %arg7[%c0_22, %c0_23], %26 {strides = array<i32>} : memref<8x1xf32, #tpu.memory_space<vmem>>, vector<8x1xf32>,
    %c1_i32 = arith.constant 1 : i32
    %39 = arith.cmpi eq, %arg1, %c1_i32 : i32
    %40 = arith.extui %39 : i1 to i32
    %c0_i32_24 = arith.constant 0 : i32
    %41 = arith.cmpi ne, %40, %c0_i32_24 : i32
    scf.if %41 {
      %c0_25 = arith.constant 0 : index
      %c0_26 = arith.constant 0 : index
      %42 = vector.load %arg7[%c0_25, %c0_26] : memref<8x1xf32, #tpu.memory_space<vmem>>, vector<8x1xf32>
      %c0_27 = arith.constant 0 : index
      %c0_28 = arith.constant 0 : index
      %43 = vector.load %arg8[%c0_27, %c0_28] : memref<8x1xf32, #tpu.memory_space<vmem>>, vector<8x1xf32>
      %44 = math.log %43 : vector<8x1xf32>
      %45 = arith.addf %42, %44 : vector<8x1xf32>
      %c0_29 = arith.constant 0 : index
      %c0_30 = arith.constant 0 : index
      %46 = vector.load %arg9[%c0_29, %c0_30] : memref<8x1xf32, #tpu.memory_space<vmem>>, vector<8x1xf32>
      %47 = arith.subf %45, %46 : vector<8x1xf32>
      %c0_31 = arith.constant 0 : index
      %c0_32 = arith.constant 0 : index
      %48 = vector.load %arg6[%c0_31, %c0_32] : memref<8x1xf32, #tpu.memory_space<vmem>>, vector<8x1xf32>
      tpu.vector_store %arg6[%c0_31, %c0_32], %47 {strides = array<i32>} : memref<8x1xf32, #tpu.memory_space<vmem>>, vector<8x1xf32>,
    } else {
    }
    return
  }
  func.func @transform_0(%arg0: i32, %arg1: i32) -> (i32, i32) {
    %c0_i32 = arith.constant 0 : i32
    %c0_i32_0 = arith.constant 0 : i32
    return %arg0, %c0_i32 : i32, i32
  }
  func.func @transform_1(%arg0: i32, %arg1: i32) -> (i32, i32) {
    %c0_i32 = arith.constant 0 : i32
    %c0_i32_0 = arith.constant 0 : i32
    return %arg0, %c0_i32 : i32, i32
  }
  func.func @transform_2(%arg0: i32, %arg1: i32) -> (i32, i32) {
    %c0_i32 = arith.constant 0 : i32
    %c0_i32_0 = arith.constant 0 : i32
    return %c0_i32, %arg1 : i32, i32
  }
  func.func @transform_3(%arg0: i32, %arg1: i32) -> (i32, i32) {
    %c0_i32 = arith.constant 0 : i32
    %c0_i32_0 = arith.constant 0 : i32
    return %c0_i32, %arg1 : i32, i32
  }
  func.func @transform_4(%arg0: i32, %arg1: i32) -> (i32, i32) {
    %c0_i32 = arith.constant 0 : i32
    %c0_i32_0 = arith.constant 0 : i32
    return %arg0, %c0_i32 : i32, i32
  }
}

</mosaic_0001>

<llo_original>
// kernel: tpu_custom_call.1
$region0: #{tpu_custom_call.1}
  #allocation0 [shape = 'u32[]', space=smem, size = 0x4, offset = 0x4, fixed_abs, tag = 'smem constant byte address 0x4 - core index']
  #allocation1 [shape = 'u32[72,128]{1,0:T(1,128)}', space=vmem, size = 0x9000, scoped, tag = 'internal scratch']
  #allocation2 [shape = 'f32[8,1]{1,0:T(8,128)}', space=vmem, size = 0x1000, scoped, tag = 'scratch operand']
  #allocation3 [shape = 'f32[8,1]{1,0:T(8,128)}', space=vmem, size = 0x1000, scoped, tag = 'scratch operand']
  #allocation4 [shape = 'f32[8,1]{1,0:T(8,128)}', space=vmem, size = 0x1000, scoped, tag = 'scratch operand']
  %s0 = inlined_call_operand.vmem [shape: s32[16,1], index: 0, kind: input, shape index: {}]
  %s1 = inlined_call_operand.vmem [shape: f32[16,128], index: 1, kind: input, shape index: {}]
  %s2 = inlined_call_operand.hbm [shape: f32[128,256], index: 2, kind: input, shape index: {}]
  %s3 = inlined_call_operand.vmem [shape: f32[1,256], index: 3, kind: input, shape index: {}]
  %s4 = inlined_call_operand.vmem [shape: f32[16,1], index: 4, kind: output, shape index: {}]
  %s5 = sld [smem:[#allocation0]]
  $region61: #{tpu_custom_call.1} parent=0
    _
  %s7 = ssub.s32 1, %s5
  %s8 = scalar_select 0, %s7, %s5
  $region1: #{tpu_custom_call.1} parent=0
    #allocation5 [shape = 'u8[131072]{0}', space=vmem, size = 0x20000, scoped, tag = 'input window, operand 2']
    #allocation6 [shape = 's32[2]{0}', space=sflag, size = 0x8, scoped, tag = 'scoped memory for tpu_custom_call.1']
    %9 = vsyncpa [#allocation6], 0
    %s10 = scalar_lea.sflag [#allocation6], 1
    %11 = vsyncpa %s10, 0
    loop: start=0, step=1, limit=6
    $region2: #{tpu_custom_call.1} parent=1 // loop_pre_header
      _
    $region3: #{tpu_custom_call.1} parent=1 // loop_header
      %s13 = sphi 0, %s17
      %p14 = scmp.ge.s32.totalorder %s13, 6
      %s20 = sphi 0, %s32
      %s21 = sphi 0, %s28
      %s22 = sphi 0, %s20
      %s23 = sphi 0, %s21
      %s24 = sphi 0, %s22
      %s25 = sphi 0, %s23
      %s35 = sphi 0, %s37
      %s38 = sphi 0, %s35
      %s39 = sphi 0, %s38
      %s55 = sphi 0, %s39
      %s61 = sphi 0, %s63
      %s64 = sphi 0, %s61
      %s65 = sphi 0, %s64
      %s81 = sphi 0, %s65
      %s87 = sphi 0, %s89
      %s90 = sphi 0, %s87
      %s91 = sphi 0, %s90
      %s107 = sphi 0, %s91
      %s113 = sphi 0, %s115
      %s116 = sphi 0, %s113
      %s117 = sphi 0, %s116
      %s133 = sphi 0, %s117
      %s139 = sphi 0, %s141
      %s142 = sphi 0, %s139
      %s143 = sphi 0, %s142
      %s159 = sphi 0, %s143
    $region4: #{tpu_custom_call.1} parent=1 // loop_header_branch
      %16 = sbr.rel (%p14) target = $region8
    $region5: #{tpu_custom_call.1} parent=1 // loop_body
      %s18 = ssub.s32 %s13, 1
      %s19 = ssub.s32 %s13, 2
      %s26 = sadd.s32 1, %s21
      %p27 = scmp.ge.s32.totalorder %s26, 2
      %s28 = scalar_select %p27, 0, %s26
      %s29 = sadd.s32 1, %s20
      %s30 = scalar_select %p27, %s29, %s20
      %p31 = scmp.ge.s32.totalorder %s30, 2
      %s32 = scalar_select %p31, 0, %s30
      %s33 = ssub.s32 %s20, %s32
      %p34 = scmp.eq.s32.totalorder %s33, 0
      %s36 = sadd.s32 %s35, 1
      %s37 = scalar_select %p34, %s35, %s36
      %p40 = pneg %p34
      %p41 = scmp.eq.s32.totalorder %s13, 3
      %p42 = por %p40, %p41
      %p43 = scmp.ne.s32.totalorder %s35, %s38
      %p44 = scmp.eq.s32.totalorder %s13, 0
      %p45 = por %p43, %p44
      %p46 = scmp.ne.s32.totalorder %s35, %s38
      %p47 = scmp.eq.s32.totalorder %s18, 3
      %p48 = por %p46, %p47
      %p49 = scmp.ne.s32.totalorder %s38, %s39
      %p50 = scmp.eq.s32.totalorder %s18, 0
      %p51 = por %p49, %p50
      %p52 = scmp.ne.s32.totalorder %s38, %s39
      %p53 = scmp.eq.s32.totalorder %s19, 3
      %p54 = por %p52, %p53
      %p56 = scmp.ne.s32.totalorder %s39, %s55
      %p57 = scmp.eq.s32.totalorder %s19, 0
      %p58 = por %p56, %p57
      %s59 = ssub.s32 %s20, %s32
      %p60 = scmp.eq.s32.totalorder %s59, 0
      %s62 = sadd.s32 %s61, 1
      %s63 = scalar_select %p60, %s61, %s62
      %p66 = pneg %p60
      %p67 = scmp.eq.s32.totalorder %s13, 3
      %p68 = por %p66, %p67
      %p69 = scmp.ne.s32.totalorder %s61, %s64
      %p70 = scmp.eq.s32.totalorder %s13, 0
      %p71 = por %p69, %p70
      %p72 = scmp.ne.s32.totalorder %s61, %s64
      %p73 = scmp.eq.s32.totalorder %s18, 3
      %p74 = por %p72, %p73
      %p75 = scmp.ne.s32.totalorder %s64, %s65
      %p76 = scmp.eq.s32.totalorder %s18, 0
      %p77 = por %p75, %p76
      %p78 = scmp.ne.s32.totalorder %s64, %s65
      %p79 = scmp.eq.s32.totalorder %s19, 3
      %p80 = por %p78, %p79
      %p82 = scmp.ne.s32.totalorder %s65, %s81
      %p83 = scmp.eq.s32.totalorder %s19, 0
      %p84 = por %p82, %p83
      %s85 = ssub.s32 %s21, %s28
      %p86 = scmp.eq.s32.totalorder %s85, 0
      %s88 = sadd.s32 %s87, 1
      %s89 = scalar_select %p86, %s87, %s88
      %p92 = pneg %p86
      %p93 = scmp.eq.s32.totalorder %s13, 3
      %p94 = por %p92, %p93
      %p95 = scmp.ne.s32.totalorder %s87, %s90
      %p96 = scmp.eq.s32.totalorder %s13, 0
      %p97 = por %p95, %p96
      %p98 = scmp.ne.s32.totalorder %s87, %s90
      %p99 = scmp.eq.s32.totalorder %s18, 3
      %p100 = por %p98, %p99
      %p101 = scmp.ne.s32.totalorder %s90, %s91
      %p102 = scmp.eq.s32.totalorder %s18, 0
      %p103 = por %p101, %p102
      %p104 = scmp.ne.s32.totalorder %s90, %s91
      %p105 = scmp.eq.s32.totalorder %s19, 3
      %p106 = por %p104, %p105
      %p108 = scmp.ne.s32.totalorder %s91, %s107
      %p109 = scmp.eq.s32.totalorder %s19, 0
      %p110 = por %p108, %p109
      %s111 = ssub.s32 %s21, %s28
      %p112 = scmp.eq.s32.totalorder %s111, 0
      %s114 = sadd.s32 %s113, 1
      %s115 = scalar_select %p112, %s113, %s114
      %p118 = pneg %p112
      %p119 = scmp.eq.s32.totalorder %s13, 3
      %p120 = por %p118, %p119
      %p121 = scmp.ne.s32.totalorder %s113, %s116
      %p122 = scmp.eq.s32.totalorder %s13, 0
      %p123 = por %p121, %p122
      %p124 = scmp.ne.s32.totalorder %s113, %s116
      %p125 = scmp.eq.s32.totalorder %s18, 3
      %p126 = por %p124, %p125
      %p127 = scmp.ne.s32.totalorder %s116, %s117
      %p128 = scmp.eq.s32.totalorder %s18, 0
      %p129 = por %p127, %p128
      %p130 = scmp.ne.s32.totalorder %s116, %s117
      %p131 = scmp.eq.s32.totalorder %s19, 3
      %p132 = por %p130, %p131
      %p134 = scmp.ne.s32.totalorder %s117, %s133
      %p135 = scmp.eq.s32.totalorder %s19, 0
      %p136 = por %p134, %p135
      %s137 = ssub.s32 %s20, %s32
      %p138 = scmp.eq.s32.totalorder %s137, 0
      %s140 = sadd.s32 %s139, 1
      %s141 = scalar_select %p138, %s139, %s140
      %p144 = pneg %p138
      %p145 = scmp.eq.s32.totalorder %s13, 3
      %p146 = por %p144, %p145
      %p147 = scmp.ne.s32.totalorder %s139, %s142
      %p148 = scmp.eq.s32.totalorder %s13, 0
      %p149 = por %p147, %p148
      %p150 = scmp.ne.s32.totalorder %s139, %s142
      %p151 = scmp.eq.s32.totalorder %s18, 3
      %p152 = por %p150, %p151
      %p153 = scmp.ne.s32.totalorder %s142, %s143
      %p154 = scmp.eq.s32.totalorder %s18, 0
      %p155 = por %p153, %p154
      %p156 = scmp.ne.s32.totalorder %s142, %s143
      %p157 = scmp.eq.s32.totalorder %s19, 3
      %p158 = por %p156, %p157
      %p160 = scmp.ne.s32.totalorder %s143, %s159
      %p161 = scmp.eq.s32.totalorder %s19, 0
      %p162 = por %p160, %p161
      %p163 = scmp.le.s32.totalorder 1, %s13
      %p164 = scmp.lt.s32.totalorder %s13, 5
      %p165 = pnand %p163, %p164
      %p166 = pneg %p165
      // Predicated region
      $region9: #{tpu_custom_call.1} parent=5 // pred_check
        _
      $region10: #{tpu_custom_call.1} parent=5 // pred_check_branch
        %168 = sbr.rel (%p165) target = $region12
      $region11: #{tpu_custom_call.1} parent=5 // pred_region
        %s169 = ssub.s32 %s13, 1
      $region12: #{tpu_custom_call.1} parent=5 // pred_fallthru
        _
      %p170 = scmp.lt.s32.totalorder %s13, 4
      // Predicated region
      $region13: #{tpu_custom_call.1} parent=5 // pred_check
        %p171 = pneg %p170
      $region14: #{tpu_custom_call.1} parent=5 // pred_check_branch
        %173 = sbr.rel (%p171) target = $region16
      $region15: #{tpu_custom_call.1} parent=5 // pred_region
        // Predicated region
        $region17: #{tpu_custom_call.1} parent=15 // pred_check
          %p174 = pneg %p45
        $region18: #{tpu_custom_call.1} parent=15 // pred_check_branch
          %176 = sbr.rel (%p174) target = $region20
        $region19: #{tpu_custom_call.1} parent=15 // pred_region
          %p177 = scmp.lt.s32.totalorder %s20, 1
          %s178 = scalar_select %p177, %s20, 1
          %s179 = smul.addr %s178, 8
          %s180 = scalar_lea.vmem %s0, %s179
        $region20: #{tpu_custom_call.1} parent=15 // pred_fallthru
          _
        // Predicated region
        $region21: #{tpu_custom_call.1} parent=15 // pred_check
          %p181 = pneg %p71
        $region22: #{tpu_custom_call.1} parent=15 // pred_check_branch
          %183 = sbr.rel (%p181) target = $region24
        $region23: #{tpu_custom_call.1} parent=15 // pred_region
          %p184 = scmp.lt.s32.totalorder %s20, 1
          %s185 = scalar_select %p184, %s20, 1
          %s186 = smul.addr %s185, 8
          %s187 = scalar_lea.vmem %s1, %s186
        $region24: #{tpu_custom_call.1} parent=15 // pred_fallthru
          _
        // Predicated region
        $region25: #{tpu_custom_call.1} parent=15 // pred_check
          %p188 = pneg %p97
        $region26: #{tpu_custom_call.1} parent=15 // pred_check_branch
          %190 = sbr.rel (%p188) target = $region28
        $region27: #{tpu_custom_call.1} parent=15 // pred_region
          %s191 = sand.u32 %s87, 1
          %s192 = scalar_lea.sflag [#allocation6], %s191
          %s193 = sand.u32 %s87, 1
          %s194 = smul.addr %s193, 128
          %s195 = scalar_lea.vmem [#allocation5], %s194
          %197 = vsyncadd %s192, 0
          %s198 = smul.addr %s21, 8
          %s199 = scalar_lea.hbm %s2, %s198
          %s200 = sshll.u32 %s199, 4
          %s201 = int_to_ptr.hbm [resolvable:$true] %s200
          %s202 = sshll.u32 %s195, 4
          %s203 = int_to_ptr.vmem [resolvable:$true] %s202
          %208 = dma.hbm_to_vmem [thread:$0]  %s201, 2048, %s203, %s192, 256, 128, 8
        $region28: #{tpu_custom_call.1} parent=15 // pred_fallthru
          _
        // Predicated region
        $region29: #{tpu_custom_call.1} parent=15 // pred_check
          %p209 = pneg %p123
        $region30: #{tpu_custom_call.1} parent=15 // pred_check_branch
          %211 = sbr.rel (%p209) target = $region32
        $region31: #{tpu_custom_call.1} parent=15 // pred_region
          %p212 = scmp.lt.s32.totalorder %s21, 1
          %s213 = scalar_select %p212, %s21, 1
          %s214 = scalar_lea.vmem %s3, %s213
        $region32: #{tpu_custom_call.1} parent=15 // pred_fallthru
          _
      $region16: #{tpu_custom_call.1} parent=5 // pred_fallthru
        _
      %p215 = scmp.le.s32.totalorder 1, %s13
      %p216 = scmp.lt.s32.totalorder %s13, 5
      %p217 = pnand %p215, %p216
      %p218 = pneg %p217
      // Predicated region
      $region33: #{tpu_custom_call.1} parent=5 // pred_check
        _
      $region34: #{tpu_custom_call.1} parent=5 // pred_check_branch
        %220 = sbr.rel (%p217) target = $region36
      $region35: #{tpu_custom_call.1} parent=5 // pred_region
        %s221 = ssub.s32 %s13, 1
        %s222 = sand.u32 %s90, 1
        %s223 = scalar_lea.sflag [#allocation6], %s222
        %s224 = sand.u32 %s90, 1
        %s225 = smul.addr %s224, 128
        %s226 = scalar_lea.vmem [#allocation5], %s225
        // Predicated region
        $region37: #{tpu_custom_call.1} parent=35 // pred_check
          %p227 = pneg %p103
        $region38: #{tpu_custom_call.1} parent=35 // pred_check_branch
          %229 = sbr.rel (%p227) target = $region40
        $region39: #{tpu_custom_call.1} parent=35 // pred_region
          %231 = dma.done %s223, 2048
        $region40: #{tpu_custom_call.1} parent=35 // pred_fallthru
          _
        %p232 = scmp.lt.s32.totalorder %s22, 1
        %s233 = scalar_select %p232, %s22, 1
        %s234 = smul.addr %s233, 8
        %s235 = scalar_lea.vmem %s0, %s234
        %p236 = pneg %p51
        %p237 = pneg %p48
        %p238 = scmp.lt.s32.totalorder %s22, 1
        %s239 = scalar_select %p238, %s22, 1
        %s240 = smul.addr %s239, 8
        %s241 = scalar_lea.vmem %s1, %s240
        %p242 = pneg %p77
        %p243 = pneg %p74
        %s244 = sand.u32 %s90, 1
        %s245 = scalar_lea.sflag [#allocation6], %s244
        %s246 = sand.u32 %s90, 1
        %s247 = smul.addr %s246, 128
        %s248 = scalar_lea.vmem [#allocation5], %s247
        %p249 = pneg %p103
        %p250 = pneg %p100
        %p251 = scmp.lt.s32.totalorder %s23, 1
        %s252 = scalar_select %p251, %s23, 1
        %s253 = scalar_lea.vmem %s3, %s252
        %p254 = pneg %p129
        %p255 = pneg %p126
        %p256 = pneg %p155
        %p257 = pneg %p152
        %p258 = scmp.lt.s32.totalorder %s22, 1
        %s259 = scalar_select %p258, %s22, 1
        %s260 = smul.addr %s259, 8
        %s261 = scalar_lea.vmem %s4, %s260
        %p262 = scmp.lt.s32.totalorder %s22, 1
        %s263 = scalar_select %p262, %s22, 1
        %s264 = smul.addr %s263, 8
        %s265 = scalar_lea.vmem %s0, %s264
        %p266 = scmp.lt.s32.totalorder %s22, 1
        %s267 = scalar_select %p266, %s22, 1
        %s268 = smul.addr %s267, 8
        %s269 = scalar_lea.vmem %s1, %s268
        %p270 = scmp.lt.s32.totalorder %s23, 1
        %s271 = scalar_select %p270, %s23, 1
        %s272 = scalar_lea.vmem %s3, %s271
        %p273 = scmp.lt.s32.totalorder %s22, 1
        %s274 = scalar_select %p273, %s22, 1
        %s275 = smul.addr %s274, 8
        %s276 = scalar_lea.vmem %s4, %s275
        %p277 = scmp.eq.s32.totalorder %s23, 0
        // Predicated region
        $region41: #{tpu_custom_call.1} parent=35 // pred_check
          %p278 = pneg %p277
        $region42: #{tpu_custom_call.1} parent=35 // pred_check_branch
          %280 = sbr.rel (%p278) target = $region44
        $region43: #{tpu_custom_call.1} parent=35 // pred_region
          %vm281 = vcmask 7168
          %282 = vst.msk [vmem:[#allocation2] sm:$0xff] %vm281, -inf
          %283 = vst.msk [vmem:[#allocation3] sm:$0xff] %vm281, 0.0
          %284 = vst.msk [vmem:[#allocation4] sm:$0xff] %vm281, 0.0
        $region44: #{tpu_custom_call.1} parent=35 // pred_fallthru
          _
        %v285 = vld [vmem:[%s269] sm:$0xff]
        %v286 = vld [vmem:[%s226] sm:$0xff]
        %v287 = vld [vmem:[%s226 + $0x8] sm:$0xff]
        %v288 = vld [vmem:[%s226 + $0x10] sm:$0xff]
        %v289 = vld [vmem:[%s226 + $0x18] sm:$0xff]
        %v290 = vld [vmem:[%s226 + $0x20] sm:$0xff]
        %v291 = vld [vmem:[%s226 + $0x28] sm:$0xff]
        %v292 = vld [vmem:[%s226 + $0x30] sm:$0xff]
        %v293 = vld [vmem:[%s226 + $0x38] sm:$0xff]
        %v294 = vld [vmem:[%s226 + $0x40] sm:$0xff]
        %v295 = vld [vmem:[%s226 + $0x48] sm:$0xff]
        %v296 = vld [vmem:[%s226 + $0x50] sm:$0xff]
        %v297 = vld [vmem:[%s226 + $0x58] sm:$0xff]
        %v298 = vld [vmem:[%s226 + $0x60] sm:$0xff]
        %v299 = vld [vmem:[%s226 + $0x68] sm:$0xff]
        %v300 = vld [vmem:[%s226 + $0x70] sm:$0xff]
        %v301 = vld [vmem:[%s226 + $0x78] sm:$0xff]
        %v302 = vld [vmem:[%s272] sm:$0x1]
        %v304 = vperm.slane %v302, 0
        %306 = vmatpush.msra.mxu0 %v301
        %307 = vmatpush.msra.mxu0 %v300
        %308 = vmatpush.msra.mxu0 %v299
        %309 = vmatpush.msra.mxu0 %v298
        %310 = vmatpush.msra.mxu0 %v297
        %311 = vmatpush.msra.mxu0 %v296
        %312 = vmatpush.msra.mxu0 %v295
        %313 = vmatpush.msra.mxu0 %v294
        %314 = vmatpush.msra.mxu0 %v293
        %315 = vmatpush.msra.mxu0 %v292
        %316 = vmatpush.msra.mxu0 %v291
        %317 = vmatpush.msra.mxu0 %v290
        %318 = vmatpush.msra.mxu0 %v289
        %319 = vmatpush.msra.mxu0 %v288
        %320 = vmatpush.msra.mxu0 %v287
        %321 = vmatpush.msra.mxu0 %v286
        %322 = vmatmul.f32.gmra.mxu0 %v285
        %v323 = vpop.f32.mrf.mxu0
        %v324 = vadd.f32 %v304, %v323
        %325 = vdwg.mxu0
        %s326 = smul.u32 %s23, 128
        %v327 = vlaneseq
        %v328 = vand.u32 %v327, 127
        %v329 = vstv %s326
        %v330 = vadd.s32 %v329, %v328
        %v331 = vld [vmem:[%s265] sm:$0xff]
        %332 = vset.pattern.permute.xlu0 0
        %333 = vperm.xlu0 %332, %v331
        %v334 = vpop.permute.xlu0 %333
        %vm335 = vcmp.eq.s32.totalorder %v330, %v334
        %v336 = vld [vmem:[#allocation4] sm:$0xff]
        %v337 = vsel %vm335, %v324, 0.0
        %338 = vadd.xlane.f32.xlu0 %v337
        %v339 = vpop.xlane.xlu0 %338
        %v340 = vadd.f32 %v336, %v339
        %vm341 = vcmask 7168
        %342 = vst.msk [vmem:[#allocation4] sm:$0xff] %vm341, %v340
        %v343 = vld [vmem:[#allocation2] sm:$0xff]
        %344 = vmax.xlane.f32.xlu0 %v324
        %v345 = vpop.xlane.xlu0 %344
        %v346 = vmax.f32 %v343, %v345
        %v347 = vsub.f32 %v343, %v346
        %v348 = vmul.f32 %v347, 1.442695
        %v349 = vpow.pop %v348
        %v350 = vld [vmem:[#allocation3] sm:$0xff]
        %v351 = vmul.f32 %v349, %v350
        %353 = vset.pattern.permute.xlu0 0
        %354 = vperm.xlu0 %353, %v346
        %v355 = vpop.permute.xlu0 %354
        %v357 = vsub.f32 %v324, %v355
        %v358 = vmul.f32 %v357, 1.442695
        %v359 = vpow.pop %v358
        %360 = vadd.xlane.f32.xlu0 %v359
        %v361 = vpop.xlane.xlu0 %360
        %v362 = vadd.f32 %v351, %v361
        %363 = vst.msk [vmem:[#allocation3] sm:$0xff] %vm341, %v362
        %364 = vst.msk [vmem:[#allocation2] sm:$0xff] %vm341, %v346
        %p365 = scmp.eq.s32.totalorder %s23, 1
        // Predicated region
        $region45: #{tpu_custom_call.1} parent=35 // pred_check
          %p366 = pneg %p365
        $region46: #{tpu_custom_call.1} parent=35 // pred_check_branch
          %368 = sbr.rel (%p366) target = $region48
        $region47: #{tpu_custom_call.1} parent=35 // pred_region
          %v369 = vld [vmem:[#allocation2] sm:$0xff]
          %v370 = vld [vmem:[#allocation3] sm:$0xff]
          %v371 = vlog2.pop %v370
          %v372 = vmul.f32 %v371, 0.6931472
          %v373 = vadd.f32 %v369, %v372
          %v374 = vld [vmem:[#allocation4] sm:$0xff]
          %v375 = vsub.f32 %v373, %v374
          %376 = vst.msk [vmem:[%s276] sm:$0xff] %vm341, %v375
        $region48: #{tpu_custom_call.1} parent=35 // pred_fallthru
          _
        %p377 = scmp.lt.s32.totalorder %s22, 1
        %s378 = scalar_select %p377, %s22, 1
        %s379 = smul.addr %s378, 8
        %s380 = scalar_lea.vmem %s4, %s379
        // Predicated region
        $region49: #{tpu_custom_call.1} parent=35 // pred_check
          %p381 = pneg %p152
        $region50: #{tpu_custom_call.1} parent=35 // pred_check_branch
          %383 = sbr.rel (%p381) target = $region52
        $region51: #{tpu_custom_call.1} parent=35 // pred_region
          _
        $region52: #{tpu_custom_call.1} parent=35 // pred_fallthru
          _
      $region36: #{tpu_custom_call.1} parent=5 // pred_fallthru
        _
      %p384 = scmp.le.s32.totalorder 2, %s13
      // Predicated region
      $region53: #{tpu_custom_call.1} parent=5 // pred_check
        %p385 = pneg %p384
      $region54: #{tpu_custom_call.1} parent=5 // pred_check_branch
        %387 = sbr.rel (%p385) target = $region56
      $region55: #{tpu_custom_call.1} parent=5 // pred_region
        %s388 = ssub.s32 %s13, 2
        // Predicated region
        $region57: #{tpu_custom_call.1} parent=55 // pred_check
          %p389 = pneg %p158
        $region58: #{tpu_custom_call.1} parent=55 // pred_check_branch
          %391 = sbr.rel (%p389) target = $region60
        $region59: #{tpu_custom_call.1} parent=55 // pred_region
          %p392 = scmp.lt.s32.totalorder %s24, 1
          %s393 = scalar_select %p392, %s24, 1
          %s394 = smul.addr %s393, 8
          %s395 = scalar_lea.vmem %s4, %s394
        $region60: #{tpu_custom_call.1} parent=55 // pred_fallthru
          _
      $region56: #{tpu_custom_call.1} parent=5 // pred_fallthru
        _
    $region6: #{tpu_custom_call.1} parent=1 // loop_footer
      %s17 = sadd.s32 1, %s13
    $region7: #{tpu_custom_call.1} parent=1 // loop_footer_branch
      %12 = sbr.rel target = $region3
    $region8: #{tpu_custom_call.1} parent=1 // loop_exit
      _
    %396 = vsyncpa [#allocation6], 1
    %s397 = scalar_lea.sflag [#allocation6], 1
    %398 = vsyncpa %s397, 1

</llo_original>
